<compile_context>
chip_gen: v5e
topology: v5e:2x2
jax: 0.10.0
libtpu: 0.0.40
codegen_flags: <defaults>
</compile_context>

<pallas_src>
import functools

import numpy as np
import jax
import jax.numpy as jnp
from jax.experimental import pallas as pl
from jax.experimental.pallas import tpu as pltpu


def legendre_roots_and_weights(num_points: int, dtype=np.float64):
    """Golub-Welsch eigen-decomposition of the Jacobi tridiagonal matrix
    (identical to the PyTorch _get_legendre_roots_and_weights)."""
    diagonal = np.zeros(num_points, dtype=np.float64)
    k = np.arange(1, num_points, dtype=np.float64)
    off_diagonal = k / np.sqrt(4.0 * k * k - 1.0)
    tridiag = np.diag(diagonal)
    if num_points > 1:
        tridiag = tridiag + np.diag(off_diagonal, 1) + np.diag(off_diagonal, -1)
    eigenvalues, eigenvectors = np.linalg.eigh(tridiag)
    roots = eigenvalues
    weights = 2.0 * eigenvectors[0, :] ** 2
    return roots.astype(dtype), weights.astype(dtype)


def _quad_kernel(lim_ref, out_ref, *, roots, weights, func):
    """lim_ref: [2, r, LANES] (plane 0 = lower, plane 1 = upper); out: [r, LANES].

    Compute is f32 regardless of storage dtype. Roots/weights are baked-in Python
    float constants (vector immediates). Two accumulators break the serial add
    chain so the EUP (exp in func) and VALU chains overlap.
    """
    lo = lim_ref[0].astype(jnp.float32)
    hi = lim_ref[1].astype(jnp.float32)
    scale = (hi - lo) * 0.5                      # scale_factor
    mid = (hi + lo) * 0.5                        # midpoint
    acc0 = jnp.zeros_like(scale)
    acc1 = jnp.zeros_like(scale)
    for k in range(0, len(roots), 2):
        acc0 = acc0 + weights[k] * func(scale * roots[k] + mid)
    for k in range(1, len(roots), 2):
        acc1 = acc1 + weights[k] * func(scale * roots[k] + mid)
    out_ref[...] = (scale * (acc0 + acc1)).astype(out_ref.dtype)


def _round_up(x: int, m: int) -> int:
    return ((x + m - 1) // m) * m


def _make_in_spec(br: int, lanes: int) -> pl.BlockSpec:
    """Input block is 2x the output block; triple-buffer it to hide the asymmetric
    input DMA. Fall back to default double-buffering if pipeline_mode is absent."""
    try:
        return pl.BlockSpec((2, br, lanes), lambda i: (0, i, 0),
                            pipeline_mode=pl.Buffered(3))
    except TypeError:
        return pl.BlockSpec((2, br, lanes), lambda i: (0, i, 0))


@functools.partial(
    jax.jit,
    static_argnames=("func", "roots", "weights", "lanes", "block_rows",
                     "grid_less_rows", "min_blocks"))
def _integrate(integration_limits, *, func, roots, weights, lanes,
               block_rows, grid_less_rows, min_blocks):
    assert integration_limits.shape[-1] == 2
    batch_shape = integration_limits.shape[:-1]
    dtype = integration_limits.dtype
    M = int(np.prod(batch_shape)) if batch_shape else 1

    # One fused de-interleave copy (under jit): [...,2] -> [M,2] -> [2,M] -> pad
    # -> [2, rows, lanes].  Tail is padded with lo = hi = 1.0 (scale = 0 there and
    # the value is in func's domain), and padded results are sliced off below.
    lim = jnp.transpose(integration_limits.reshape(M, 2))
    m_pad = _round_up(M, lanes)
    if m_pad != M:
        lim = jnp.pad(lim, ((0, 0), (0, m_pad - M)), constant_values=1.0)
    rows = m_pad // lanes
    lim = lim.reshape(2, rows, lanes)

    kernel = functools.partial(_quad_kernel, roots=roots, weights=weights,
                               func=func)
    out_struct = jax.ShapeDtypeStruct((rows, lanes), dtype)

    if rows <= grid_less_rows:
        # Genuinely tiny problem: grid-less single-block launch, no pipelining
        # machinery / per-step overhead at all.
        out = pl.pallas_call(kernel, out_shape=out_struct)(lim)
    else:
        # Gridded path: pick a block size that yields at least `min_blocks`
        # grid steps (pipelining overlap + v7x megacore sharding), capped at
        # `block_rows` (512 rows x 512 lanes = 1 MiB output / 2 MiB input block).
        br = min(block_rows, _round_up(pl.cdiv(rows, min_blocks), 8))
        br = max(br, 8)
        out = pl.pallas_call(
            kernel,
            out_shape=out_struct,
            grid=(pl.cdiv(rows, br),),
            in_specs=[_make_in_spec(br, lanes)],
            out_specs=pl.BlockSpec((br, lanes), lambda i: (i, 0)),
            compiler_params=pltpu.CompilerParams(
                dimension_semantics=("parallel",),
                vmem_limit_bytes=32 * 1024 * 1024),
        )(lim)

    # Epilogue stays inside the same jit: the slice/reshape fuse (and are no-ops
    # when M is lane-divisible).
    out = out.reshape(m_pad)[:M]
    return out.reshape(*batch_shape, 1)   # keepdim=True over the quadrature dim


def gauss_legendre_integrate(func, integration_limits, roots, weights, *,
                             lanes=512, block_rows=512, grid_less_rows=64,
                             min_blocks=4):
    """integration_limits: [..., 2]  ->  integral [..., 1] (dim=-1, keepdim=True)."""
    roots_c = tuple(float(r) for r in np.asarray(roots, dtype=np.float64))
    weights_c = tuple(float(w) for w in np.asarray(weights, dtype=np.float64))
    return _integrate(integration_limits, func=func, roots=roots_c,
                      weights=weights_c, lanes=lanes, block_rows=block_rows,
                      grid_less_rows=grid_less_rows, min_blocks=min_blocks)


def reference_integrate(func, integration_limits, roots, weights):
    """Pure-JAX reference mirroring the PyTorch forward (dim=-1, keepdim=True)."""
    lower = integration_limits[..., 0]
    upper = integration_limits[..., 1]
    scale = (upper - lower) / 2.0
    mid = (upper + lower) / 2.0
    r = jnp.asarray(roots, dtype=jnp.float32)
    w = jnp.asarray(weights, dtype=jnp.float32)
    pts = scale[..., None] * r + mid[..., None]              # [..., P]
    vals = func(pts)
    return scale[..., None] * jnp.sum(vals * w, axis=-1, keepdims=True)


if __name__ == "__main__":
    num_points = 5
    roots_np, weights_np = legendre_roots_and_weights(num_points)

    # Integrand (elementwise): Gaussian exp(-x^2).
    func = lambda x: jnp.exp(-x * x)

    def make_limits(key, shape, dtype=jnp.float32):
        k1, k2 = jax.random.split(key)
        lower = jax.random.uniform(k1, shape, jnp.float32, minval=-2.0, maxval=-0.1)
        upper = jax.random.uniform(k2, shape, jnp.float32, minval=0.1, maxval=2.0)
        return jnp.stack([lower, upper], axis=-1).astype(dtype)   # [..., 2]

    # Cases: (batch_shape, dtype, overrides, tolerance)
    #   a) small divisible, grid-less             b) padded tail, grid-less
    #   c) single interval (edge case)            d) gridded path, 4 blocks
    #   e) bf16 storage (f32 math in-kernel)
    cases = [
        ((4, 16),     jnp.float32,  {},                                      2e-5),
        ((2, 4, 100), jnp.float32,  {},                                      2e-5),
        ((),          jnp.float32,  {},                                      2e-5),
        ((32, 512),   jnp.float32,  dict(block_rows=8, grid_less_rows=0),    2e-5),
        ((4, 300),    jnp.bfloat16, {},                                      2e-2),
    ]

    key = jax.random.PRNGKey(0)
    keys = jax.random.split(key, len(cases))
    for (shape, dtype, overrides, tol), k in zip(cases, keys):
        limits = make_limits(k, shape, dtype)
        out = gauss_legendre_integrate(func, limits, roots_np, weights_np,
                                       **overrides)
        out = jax.block_until_ready(out)
        ref = reference_integrate(func, limits.astype(jnp.float32),
                                  roots_np, weights_np)
        assert out.shape == shape + (1,)
        np.testing.assert_allclose(np.asarray(out.astype(jnp.float32)),
                                   np.asarray(ref), rtol=tol, atol=tol)

    print("KERNEL_OK")
</pallas_src>

<mosaic_0001>
module attributes {stable_mosaic.version = 11 : i64} {
  func.func @_quad_kernel(%arg0: memref<2x1x512xf32, #tpu.memory_space<vmem>>, %arg1: memref<1x512xf32, #tpu.memory_space<vmem>>) attributes {dimension_semantics = [], scalar_prefetch = 0 : i64, scratch_operands = 0 : i64, tpu.core_type = #tpu.core_type<tc>} {
    %c0 = arith.constant 0 : index
    %c0_0 = arith.constant 0 : index
    %c0_1 = arith.constant 0 : index
    %0 = vector.load %arg0[%c0, %c0_0, %c0_1] : memref<2x1x512xf32, #tpu.memory_space<vmem>>, vector<1x1x512xf32>
    %1 = vector.shape_cast %0 : vector<1x1x512xf32> to vector<1x512xf32>
    %c1 = arith.constant 1 : index
    %c0_2 = arith.constant 0 : index
    %c0_3 = arith.constant 0 : index
    %2 = vector.load %arg0[%c1, %c0_2, %c0_3] : memref<2x1x512xf32, #tpu.memory_space<vmem>>, vector<1x1x512xf32>
    %3 = vector.shape_cast %2 : vector<1x1x512xf32> to vector<1x512xf32>
    %4 = arith.subf %3, %1 : vector<1x512xf32>
    %cst = arith.constant 5.000000e-01 : f32
    %5 = vector.broadcast %cst : f32 to vector<1x512xf32>
    %6 = arith.mulf %4, %5 : vector<1x512xf32>
    %7 = arith.addf %3, %1 : vector<1x512xf32>
    %cst_4 = arith.constant 5.000000e-01 : f32
    %8 = vector.broadcast %cst_4 : f32 to vector<1x512xf32>
    %9 = arith.mulf %7, %8 : vector<1x512xf32>
    %cst_5 = arith.constant 0.000000e+00 : f32
    %10 = vector.broadcast %cst_5 : f32 to vector<1x512xf32>
    %cst_6 = arith.constant 0.000000e+00 : f32
    %11 = vector.broadcast %cst_6 : f32 to vector<1x512xf32>
    %cst_7 = arith.constant -0.906179845 : f32
    %12 = vector.broadcast %cst_7 : f32 to vector<1x512xf32>
    %13 = arith.mulf %6, %12 : vector<1x512xf32>
    %14 = arith.addf %13, %9 : vector<1x512xf32>
    %cst_8 = arith.constant 0.000000e+00 : f32
    %15 = vector.broadcast %cst_8 : f32 to vector<1x512xf32>
    %16 = arith.subf %15, %14 : vector<1x512xf32>
    %17 = arith.mulf %16, %14 : vector<1x512xf32>
    %18 = math.exp %17 : vector<1x512xf32>
    %cst_9 = arith.constant 0.236926883 : f32
    %19 = vector.broadcast %cst_9 : f32 to vector<1x512xf32>
    %20 = arith.mulf %19, %18 : vector<1x512xf32>
    %21 = arith.addf %10, %20 : vector<1x512xf32>
    %cst_10 = arith.constant 4.75059289E-17 : f32
    %22 = vector.broadcast %cst_10 : f32 to vector<1x512xf32>
    %23 = arith.mulf %6, %22 : vector<1x512xf32>
    %24 = arith.addf %23, %9 : vector<1x512xf32>
    %cst_11 = arith.constant 0.000000e+00 : f32
    %25 = vector.broadcast %cst_11 : f32 to vector<1x512xf32>
    %26 = arith.subf %25, %24 : vector<1x512xf32>
    %27 = arith.mulf %26, %24 : vector<1x512xf32>
    %28 = math.exp %27 : vector<1x512xf32>
    %cst_12 = arith.constant 0.568888903 : f32
    %29 = vector.broadcast %cst_12 : f32 to vector<1x512xf32>
    %30 = arith.mulf %29, %28 : vector<1x512xf32>
    %31 = arith.addf %21, %30 : vector<1x512xf32>
    %cst_13 = arith.constant 0.906179845 : f32
    %32 = vector.broadcast %cst_13 : f32 to vector<1x512xf32>
    %33 = arith.mulf %6, %32 : vector<1x512xf32>
    %34 = arith.addf %33, %9 : vector<1x512xf32>
    %cst_14 = arith.constant 0.000000e+00 : f32
    %35 = vector.broadcast %cst_14 : f32 to vector<1x512xf32>
    %36 = arith.subf %35, %34 : vector<1x512xf32>
    %37 = arith.mulf %36, %34 : vector<1x512xf32>
    %38 = math.exp %37 : vector<1x512xf32>
    %cst_15 = arith.constant 0.236926883 : f32
    %39 = vector.broadcast %cst_15 : f32 to vector<1x512xf32>
    %40 = arith.mulf %39, %38 : vector<1x512xf32>
    %41 = arith.addf %31, %40 : vector<1x512xf32>
    %cst_16 = arith.constant -0.538469315 : f32
    %42 = vector.broadcast %cst_16 : f32 to vector<1x512xf32>
    %43 = arith.mulf %6, %42 : vector<1x512xf32>
    %44 = arith.addf %43, %9 : vector<1x512xf32>
    %cst_17 = arith.constant 0.000000e+00 : f32
    %45 = vector.broadcast %cst_17 : f32 to vector<1x512xf32>
    %46 = arith.subf %45, %44 : vector<1x512xf32>
    %47 = arith.mulf %46, %44 : vector<1x512xf32>
    %48 = math.exp %47 : vector<1x512xf32>
    %cst_18 = arith.constant 0.478628665 : f32
    %49 = vector.broadcast %cst_18 : f32 to vector<1x512xf32>
    %50 = arith.mulf %49, %48 : vector<1x512xf32>
    %51 = arith.addf %11, %50 : vector<1x512xf32>
    %cst_19 = arith.constant 0.538469315 : f32
    %52 = vector.broadcast %cst_19 : f32 to vector<1x512xf32>
    %53 = arith.mulf %6, %52 : vector<1x512xf32>
    %54 = arith.addf %53, %9 : vector<1x512xf32>
    %cst_20 = arith.constant 0.000000e+00 : f32
    %55 = vector.broadcast %cst_20 : f32 to vector<1x512xf32>
    %56 = arith.subf %55, %54 : vector<1x512xf32>
    %57 = arith.mulf %56, %54 : vector<1x512xf32>
    %58 = math.exp %57 : vector<1x512xf32>
    %cst_21 = arith.constant 0.478628665 : f32
    %59 = vector.broadcast %cst_21 : f32 to vector<1x512xf32>
    %60 = arith.mulf %59, %58 : vector<1x512xf32>
    %61 = arith.addf %51, %60 : vector<1x512xf32>
    %62 = arith.addf %41, %61 : vector<1x512xf32>
    %63 = arith.mulf %6, %62 : vector<1x512xf32>
    %c0_22 = arith.constant 0 : index
    %c0_23 = arith.constant 0 : index
    %64 = vector.load %arg1[%c0_22, %c0_23] : memref<1x512xf32, #tpu.memory_space<vmem>>, vector<1x512xf32>
    tpu.vector_store %arg1[%c0_22, %c0_23], %63 {strides = array<i32>} : memref<1x512xf32, #tpu.memory_space<vmem>>, vector<1x512xf32>,
    return
  }
}

</mosaic_0001>

<llo_original>
// kernel: _integrate.1
$region0: #{_integrate.1}
  #allocation0 [shape = 'u32[]', space=smem, size = 0x4, offset = 0x4, fixed_abs, tag = 'smem constant byte address 0x4 - core index']
  #allocation1 [shape = 'u32[72,128]{1,0:T(1,128)}', space=vmem, size = 0x9000, scoped, tag = 'internal scratch']
  %s0 = inlined_call_operand.vmem [shape: f32[2,1,512], index: 0, kind: input, shape index: {}]
  %s1 = inlined_call_operand.vmem [shape: f32[1,512], index: 1, kind: output, shape index: {}]
  %s2 = sld [smem:[#allocation0]]
  $region14: #{_integrate.1} parent=0
    _
  %s4 = ssub.s32 1, %s2
  %s5 = scalar_select 0, %s4, %s2
  // Predicated region
  $region2: #{_integrate.1} parent=0 // pred_check
    _
  $region3: #{_integrate.1} parent=0 // pred_check_branch
    %7 = sbr.rel (0) target = $region5
  $region4: #{_integrate.1} parent=0 // pred_region
    _
  $region5: #{_integrate.1} parent=0 // pred_fallthru
    _
  %v8 = vld [vmem:[%s0] sm:$0xf]
  %s9 = scalar_lea.vmem %s0, 4
  %v10 = vld [vmem:[%s9] sm:$0xf]
  %v11 = vsub.f32 %v10, %v8
  %v12 = vmul.f32 %v11, 0.5
  %v13 = vadd.f32 %v10, %v8
  %v14 = vmul.f32 %v13, 0.5
  %v15 = vmul.f32 %v12, -0.90617985
  %v16 = vadd.f32 %v15, %v14
  %v17 = vsub.f32 0.0, %v16
  %v18 = vmul.f32 %v17, %v16
  %v19 = vmul.f32 %v18, 1.442695
  %v20 = vpow.pop %v19
  %v21 = vmul.f32 %v20, 0.23692688
  %v22 = vadd.f32 %v21, 0.0
  %v23 = vmul.f32 %v12, 4.750593e-17
  %v24 = vadd.f32 %v23, %v14
  %v25 = vsub.f32 0.0, %v24
  %v26 = vmul.f32 %v25, %v24
  %v27 = vmul.f32 %v26, 1.442695
  %v28 = vpow.pop %v27
  %v29 = vmul.f32 %v28, 0.5688889
  %v30 = vadd.f32 %v22, %v29
  %v31 = vmul.f32 %v12, 0.90617985
  %v32 = vadd.f32 %v31, %v14
  %v33 = vsub.f32 0.0, %v32
  %v34 = vmul.f32 %v33, %v32
  %v35 = vmul.f32 %v34, 1.442695
  %v36 = vpow.pop %v35
  %v37 = vmul.f32 %v36, 0.23692688
  %v38 = vadd.f32 %v30, %v37
  %v39 = vmul.f32 %v12, -0.5384693
  %v40 = vadd.f32 %v39, %v14
  %v41 = vsub.f32 0.0, %v40
  %v42 = vmul.f32 %v41, %v40
  %v43 = vmul.f32 %v42, 1.442695
  %v44 = vpow.pop %v43
  %v45 = vmul.f32 %v44, 0.47862867
  %v46 = vadd.f32 %v45, 0.0
  %v47 = vmul.f32 %v12, 0.5384693
  %v48 = vadd.f32 %v47, %v14
  %v49 = vsub.f32 0.0, %v48
  %v50 = vmul.f32 %v49, %v48
  %v51 = vmul.f32 %v50, 1.442695
  %v52 = vpow.pop %v51
  %v53 = vmul.f32 %v52, 0.47862867
  %v54 = vadd.f32 %v46, %v53
  %v55 = vadd.f32 %v38, %v54
  %v56 = vmul.f32 %v12, %v55
  %v57 = vlaneseq
  %vm58 = vcmp.ge.s32.totalorder %v57, 0
  %vm59 = vcmp.lt.s32.totalorder %v57, 512
  %vm60 = vmand %vm58, %vm59
  %61 = vst.msk [vmem:[%s1] sm:$0xf] %vm60, %v56
  // Predicated region
  $region6: #{_integrate.1} parent=0 // pred_check
    _
  $region7: #{_integrate.1} parent=0 // pred_check_branch
    %63 = sbr.rel (0) target = $region9
  $region8: #{_integrate.1} parent=0 // pred_region
    _
  $region9: #{_integrate.1} parent=0 // pred_fallthru
    _
  // Predicated region
  $region10: #{_integrate.1} parent=0 // pred_check
    _
  $region11: #{_integrate.1} parent=0 // pred_check_branch
    %65 = sbr.rel (0) target = $region13
  $region12: #{_integrate.1} parent=0 // pred_region
    _
  $region13: #{_integrate.1} parent=0 // pred_fallthru
    _

</llo_original>
